<compile_context>
chip_gen: v7x
topology: tpu7x:2x2x1
jax: 0.10.0
libtpu: 0.0.40
codegen_flags: <defaults>
</compile_context>

<pallas_src>
import math

import jax
import jax.numpy as jnp
from jax.experimental import pallas as pl
from jax.experimental.pallas import tpu as pltpu


# ----------------------------------------------------------------------------
# Pallas kernel: q/k/v projections + channel softmax gate + output proj + residual.
# Layout: channels on sublanes, spatial columns on lanes.
# ----------------------------------------------------------------------------
def attention_kernel(x_ref, w1_ref, w2_ref, w3_ref, w4_ref, o_ref):
    # x_ref  : (1, C_in, TN)   -- channels on sublanes, spatial cols on lanes
    # w1/2/3 : (C_mid, C_in)
    # w4_ref : (C_out, C_mid)
    # o_ref  : (1, C_out, TN)
    x = x_ref[0]  # (C_in, TN), native dtype, resident in VMEM for all three dots

    # Projections: native-dtype operands, f32 accumulation on the MXU.
    q = jnp.dot(w1_ref[...], x, preferred_element_type=jnp.float32)
    k = jnp.dot(w2_ref[...], x, preferred_element_type=jnp.float32)
    v = jnp.dot(w3_ref[...], x, preferred_element_type=jnp.float32)

    # Softmax over the channel axis (sublane reduction), f32 throughout.
    # The max-subtraction is kept for numerical safety (cheap XLU reduce); the
    # kernel is memory-bound so it is not on the critical path.
    s = q * k
    s = s - jnp.max(s, axis=0, keepdims=True)
    e = jnp.exp(s)
    inv = pl.reciprocal(jnp.sum(e, axis=0, keepdims=True), approx=False)  # exact
    gate = e * inv

    # Output projection + residual add (column-local, so ragged/garbage lanes in
    # the last spatial block cannot contaminate valid columns).
    o = (gate * v).astype(w4_ref.dtype)
    y = jnp.dot(w4_ref[...], o, preferred_element_type=jnp.float32)  # (C_out, TN)
    o_ref[0] = (y + x.astype(jnp.float32)).astype(o_ref.dtype)


# ----------------------------------------------------------------------------
# Tile selection with an explicit per-generation VMEM budget.
# ----------------------------------------------------------------------------
def _round_up(x, m):
    return ((x + m - 1) // m) * m


def _select_tile(hw, batch, c_in, c_mid, c_out, itemsize):
    """Pick the spatial tile width (lanes) and a safe scoped-VMEM limit."""
    try:
        vmem_cap = int(pltpu.get_tpu_info().vmem_capacity_bytes)
    except Exception:
        vmem_cap = 64 * 1024 * 1024            # v7x-safe fallback (smallest gen)
    budget = (3 * vmem_cap) // 4               # headroom for compiler scratch

    # Grid-invariant weights, double-buffered by the default pipeline.
    w_bytes = 2 * (3 * c_mid * c_in + c_out * c_mid) * itemsize

    # Bytes per spatial column:
    #   * double-buffered input + output tiles (native dtype)
    io_col = 2 * (c_in + c_out) * itemsize
    #   * f32 kernel intermediates: q,k,v (3*c_mid), s/e temps (~2*c_mid),
    #     y (c_out), plus the down-cast gate*v operand (c_mid, native dtype)
    f32_col = (3 * c_mid + 2 * c_mid + c_out) * 4 + c_mid * itemsize
    col_bytes = io_col + f32_col

    # Per-step input target ~ vmem_cap/32: ~4 MiB on 128 MiB parts (v5e/v6e),
    # ~2 MiB on v7x (64 MiB) -- still on the ~85% HBM-roofline plateau.
    tn_target = max(128, (vmem_cap // 32) // max(1, c_in * itemsize))
    tn_cap = max(128, (budget - w_bytes) // max(1, col_bytes))
    tn = min(tn_target, tn_cap, _round_up(hw, 128))

    # Megacore: guarantee >= 2 total grid steps when batch == 1 (v7x has 2 TCs).
    if batch == 1 and hw > 128:
        tn = min(tn, max(128, _round_up(-(-hw // 2), 128)))

    tn = max(128, (tn // 128) * 128)           # lane-dense: multiple of 128

    vmem_need = w_bytes + col_bytes * tn
    vmem_limit = int(min(budget, max(vmem_need + vmem_need // 2, 32 * 1024 * 1024)))
    return tn, vmem_limit


# ----------------------------------------------------------------------------
# Wrapper: no NCHW transpose, no padding, no output slice.
# ----------------------------------------------------------------------------
def attention_forward(x_nchw, w1, w2, w3, w4, *, tn=None):
    """x_nchw: (B, C_in, H, W).  w1/w2/w3: (C_mid, C_in), w4: (C_out, C_mid)."""
    B, C_in, H, W = x_nchw.shape
    C_mid = w1.shape[0]
    C_out = w4.shape[0]
    assert C_out == C_in, "residual add requires out_channel == in_channel"

    HW = H * W
    itemsize = jnp.dtype(x_nchw.dtype).itemsize
    tn_auto, vmem_limit = _select_tile(HW, B, C_in, C_mid, C_out, itemsize)
    if tn is None:
        tn = tn_auto

    # NCHW -> (B, C, H*W): pure reshape, no extra HBM pass.
    x_rows = x_nchw.reshape(B, C_in, HW)

    # Ragged last spatial block is handled by Pallas (out-of-bounds stores are
    # masked; all kernel math is column-local so garbage lanes cannot leak).
    grid = (B, pl.cdiv(HW, tn))

    out = pl.pallas_call(
        attention_kernel,
        out_shape=jax.ShapeDtypeStruct((B, C_out, HW), x_nchw.dtype),
        grid_spec=pltpu.PrefetchScalarGridSpec(
            num_scalar_prefetch=0,
            grid=grid,
            in_specs=[
                pl.BlockSpec((1, C_in, tn), lambda b, j: (b, 0, j)),
                pl.BlockSpec((C_mid, C_in), lambda b, j: (0, 0)),
                pl.BlockSpec((C_mid, C_in), lambda b, j: (0, 0)),
                pl.BlockSpec((C_mid, C_in), lambda b, j: (0, 0)),
                pl.BlockSpec((C_out, C_mid), lambda b, j: (0, 0)),
            ],
            out_specs=pl.BlockSpec((1, C_out, tn), lambda b, j: (b, 0, j)),
        ),
        compiler_params=pltpu.CompilerParams(
            dimension_semantics=("parallel", "parallel"),
            vmem_limit_bytes=vmem_limit,
        ),
    )(x_rows, w1, w2, w3, w4)

    return out.reshape(B, C_out, H, W)


# ----------------------------------------------------------------------------
# Deterministic parameter construction (mirrors _weights_init + spectral_norm;
# exact SVD-based spectral norm is done host-side, outside the kernel).
# ----------------------------------------------------------------------------
def _make_conv_weight(key, out_c, in_c):
    # 1x1 conv weight (out_c, in_c, 1, 1) viewed as (out_c, in_c), bias=False.
    w = jax.random.normal(key, (out_c, in_c), dtype=jnp.float32)
    w = w / math.sqrt(out_c * in_c * 1 * 1)          # _weights_init scaling
    sigma = jnp.linalg.norm(w, ord=2)                 # largest singular value
    return w / sigma


def _reference_forward(x, w1, w2, w3, w4):
    # Pure-JAX reference (NCHW), used only as a correctness check.
    def conv1x1(x, w):  # w: (out, in)
        return jnp.einsum('oc,bchw->bohw', w, x)
    q = conv1x1(x, w1)
    k = conv1x1(x, w2)
    gate = jax.nn.softmax(q * k, axis=1)
    v = conv1x1(x, w3)
    return conv1x1(gate * v, w4) + x


if __name__ == "__main__":
    B, C_in, H, W = 2, 4, 16, 16
    C_mid = C_in // 2
    C_out = C_in  # residual add requires out_channel == in_channel

    root = jax.random.PRNGKey(0)
    kx, k1, k2, k3, k4 = jax.random.split(root, 5)

    x = jax.random.normal(kx, (B, C_in, H, W), dtype=jnp.float32)
    w1 = _make_conv_weight(k1, C_mid, C_in)
    w2 = _make_conv_weight(k2, C_mid, C_in)
    w3 = _make_conv_weight(k3, C_mid, C_in)
    w4 = _make_conv_weight(k4, C_out, C_mid)

    y = attention_forward(x, w1, w2, w3, w4)
    y = jax.block_until_ready(y)

    y_ref = _reference_forward(x, w1, w2, w3, w4)
    assert y.shape == (B, C_out, H, W)
    # Softmax path is exact now (approx reciprocal removed).  Tolerance leaves
    # margin only for possible reduced-precision f32 MXU passes on real hardware.
    assert jnp.allclose(y, y_ref, atol=1e-2, rtol=1e-2), "mismatch vs reference"

    print("KERNEL_OK")
</pallas_src>

<mosaic_0001>
module attributes {stable_mosaic.version = 11 : i64} {
  func.func @attention_kernel(%arg0: i32, %arg1: i32, %arg2: memref<1x4x256xf32, #tpu.memory_space<vmem>>, %arg3: memref<2x4xf32, #tpu.memory_space<vmem>>, %arg4: memref<2x4xf32, #tpu.memory_space<vmem>>, %arg5: memref<2x4xf32, #tpu.memory_space<vmem>>, %arg6: memref<4x2xf32, #tpu.memory_space<vmem>>, %arg7: memref<1x4x256xf32, #tpu.memory_space<vmem>>) attributes {dimension_semantics = [#tpu.dimension_semantics<parallel>, #tpu.dimension_semantics<parallel>], iteration_bounds = array<i64: 2, 1>, scalar_prefetch = 0 : i64, scratch_operands = 0 : i64, tpu.core_type = #tpu.core_type<tc>, window_params = [{transform_indices = @transform_0, window_bounds = array<i64: 1, 4, 256>}, {pipeline_mode = #tpu.pipeline_mode<synchronous>, transform_indices = @transform_1, window_bounds = array<i64: 2, 4>}, {pipeline_mode = #tpu.pipeline_mode<synchronous>, transform_indices = @transform_2, window_bounds = array<i64: 2, 4>}, {pipeline_mode = #tpu.pipeline_mode<synchronous>, transform_indices = @transform_3, window_bounds = array<i64: 2, 4>}, {pipeline_mode = #tpu.pipeline_mode<synchronous>, transform_indices = @transform_4, window_bounds = array<i64: 4, 2>}, {transform_indices = @transform_5, window_bounds = array<i64: 1, 4, 256>}]} {
    %c0 = arith.constant 0 : index
    %c0_0 = arith.constant 0 : index
    %c0_1 = arith.constant 0 : index
    %0 = vector.load %arg2[%c0, %c0_0, %c0_1] : memref<1x4x256xf32, #tpu.memory_space<vmem>>, vector<1x4x256xf32>
    %1 = vector.shape_cast %0 : vector<1x4x256xf32> to vector<4x256xf32>
    %c0_2 = arith.constant 0 : index
    %c0_3 = arith.constant 0 : index
    %2 = vector.load %arg3[%c0_2, %c0_3] : memref<2x4xf32, #tpu.memory_space<vmem>>, vector<2x4xf32>
    %cst = arith.constant dense<0.000000e+00> : vector<2x256xf32>
    %3 = tpu.matmul %2, %1, %cst {dimension_numbers = #tpu.dot_dimension_numbers<[1], [0], [0], [1], [0, 0, 1, 1], [], []>} : vector<2x4xf32>, vector<4x256xf32>, vector<2x256xf32> -> vector<2x256xf32>
    %c0_4 = arith.constant 0 : index
    %c0_5 = arith.constant 0 : index
    %4 = vector.load %arg4[%c0_4, %c0_5] : memref<2x4xf32, #tpu.memory_space<vmem>>, vector<2x4xf32>
    %cst_6 = arith.constant dense<0.000000e+00> : vector<2x256xf32>
    %5 = tpu.matmul %4, %1, %cst_6 {dimension_numbers = #tpu.dot_dimension_numbers<[1], [0], [0], [1], [0, 0, 1, 1], [], []>} : vector<2x4xf32>, vector<4x256xf32>, vector<2x256xf32> -> vector<2x256xf32>
    %c0_7 = arith.constant 0 : index
    %c0_8 = arith.constant 0 : index
    %6 = vector.load %arg5[%c0_7, %c0_8] : memref<2x4xf32, #tpu.memory_space<vmem>>, vector<2x4xf32>
    %cst_9 = arith.constant dense<0.000000e+00> : vector<2x256xf32>
    %7 = tpu.matmul %6, %1, %cst_9 {dimension_numbers = #tpu.dot_dimension_numbers<[1], [0], [0], [1], [0, 0, 1, 1], [], []>} : vector<2x4xf32>, vector<4x256xf32>, vector<2x256xf32> -> vector<2x256xf32>
    %8 = arith.mulf %3, %5 : vector<2x256xf32>
    %cst_10 = arith.constant dense<0xFF800000> : vector<256xf32>
    %9 = vector.multi_reduction <maximumf>, %8, %cst_10 [0] : vector<2x256xf32> to vector<256xf32>
    %10 = vector.shape_cast %9 : vector<256xf32> to vector<1x256xf32>
    %11 = vector.broadcast %10 : vector<1x256xf32> to vector<2x256xf32>
    %12 = arith.subf %8, %11 : vector<2x256xf32>
    %13 = math.exp %12 : vector<2x256xf32>
    %cst_11 = arith.constant dense<0.000000e+00> : vector<256xf32>
    %14 = vector.multi_reduction <add>, %13, %cst_11 [0] : vector<2x256xf32> to vector<256xf32>
    %15 = vector.shape_cast %14 : vector<256xf32> to vector<1x256xf32>
    %16 = tpu.reciprocal %15 : vector<1x256xf32> -> vector<1x256xf32>
    %17 = vector.broadcast %16 : vector<1x256xf32> to vector<2x256xf32>
    %18 = arith.mulf %13, %17 : vector<2x256xf32>
    %19 = arith.mulf %18, %7 : vector<2x256xf32>
    %c0_12 = arith.constant 0 : index
    %c0_13 = arith.constant 0 : index
    %20 = vector.load %arg6[%c0_12, %c0_13] : memref<4x2xf32, #tpu.memory_space<vmem>>, vector<4x2xf32>
    %cst_14 = arith.constant dense<0.000000e+00> : vector<4x256xf32>
    %21 = tpu.matmul %20, %19, %cst_14 {dimension_numbers = #tpu.dot_dimension_numbers<[1], [0], [0], [1], [0, 0, 1, 1], [], []>} : vector<4x2xf32>, vector<2x256xf32>, vector<4x256xf32> -> vector<4x256xf32>
    %22 = arith.addf %21, %1 : vector<4x256xf32>
    %c0_15 = arith.constant 0 : index
    %c0_16 = arith.constant 0 : index
    %c0_17 = arith.constant 0 : index
    %23 = vector.load %arg7[%c0_15, %c0_16, %c0_17] : memref<1x4x256xf32, #tpu.memory_space<vmem>>, vector<1x4x256xf32>
    %24 = vector.shape_cast %23 : vector<1x4x256xf32> to vector<4x256xf32>
    %25 = vector.shape_cast %22 : vector<4x256xf32> to vector<1x4x256xf32>
    tpu.vector_store %arg7[%c0_15, %c0_16, %c0_17], %25 {strides = array<i32>} : memref<1x4x256xf32, #tpu.memory_space<vmem>>, vector<1x4x256xf32>,
    return
  }
  func.func @transform_0(%arg0: i32, %arg1: i32) -> (i32, i32, i32) {
    %c0_i32 = arith.constant 0 : i32
    %c0_i32_0 = arith.constant 0 : i32
    return %arg0, %c0_i32, %arg1 : i32, i32, i32
  }
  func.func @transform_1(%arg0: i32, %arg1: i32) -> (i32, i32) {
    %c0_i32 = arith.constant 0 : i32
    %c0_i32_0 = arith.constant 0 : i32
    %c0_i32_1 = arith.constant 0 : i32
    return %c0_i32, %c0_i32_0 : i32, i32
  }
  func.func @transform_2(%arg0: i32, %arg1: i32) -> (i32, i32) {
    %c0_i32 = arith.constant 0 : i32
    %c0_i32_0 = arith.constant 0 : i32
    %c0_i32_1 = arith.constant 0 : i32
    return %c0_i32, %c0_i32_0 : i32, i32
  }
  func.func @transform_3(%arg0: i32, %arg1: i32) -> (i32, i32) {
    %c0_i32 = arith.constant 0 : i32
    %c0_i32_0 = arith.constant 0 : i32
    %c0_i32_1 = arith.constant 0 : i32
    return %c0_i32, %c0_i32_0 : i32, i32
  }
  func.func @transform_4(%arg0: i32, %arg1: i32) -> (i32, i32) {
    %c0_i32 = arith.constant 0 : i32
    %c0_i32_0 = arith.constant 0 : i32
    %c0_i32_1 = arith.constant 0 : i32
    return %c0_i32, %c0_i32_0 : i32, i32
  }
  func.func @transform_5(%arg0: i32, %arg1: i32) -> (i32, i32, i32) {
    %c0_i32 = arith.constant 0 : i32
    %c0_i32_0 = arith.constant 0 : i32
    return %arg0, %c0_i32, %arg1 : i32, i32, i32
  }
}

</mosaic_0001>

<llo_original>
// kernel: tpu_custom_call.1
$region0: #{tpu_custom_call.1}
  #allocation0 [shape = 'u32[]', space=smem, size = 0x4, offset = 0x4, fixed_abs, tag = 'smem constant byte address 0x4 - core index']
  #allocation1 [shape = 'u32[144,128]{1,0:T(1,128)}', space=vmem, size = 0x12000, scoped, tag = 'internal scratch']
  %s0 = inlined_call_operand.hbm [shape: f32[2,4,256], index: 0, kind: input, shape index: {}]
  %s1 = inlined_call_operand.vmem [shape: f32[2,4], index: 1, kind: input, shape index: {}]
  %s2 = inlined_call_operand.vmem [shape: f32[2,4], index: 2, kind: input, shape index: {}]
  %s3 = inlined_call_operand.vmem [shape: f32[2,4], index: 3, kind: input, shape index: {}]
  %s4 = inlined_call_operand.vmem [shape: f32[4,2], index: 4, kind: input, shape index: {}]
  %s5 = inlined_call_operand.hbm [shape: f32[2,4,256], index: 5, kind: output, shape index: {}]
  %s6 = sld [smem:[#allocation0]]
  $region57: #{tpu_custom_call.1} parent=0
    _
  %s8 = ssub.s32 1, %s6
  %s9 = scalar_select 0, %s8, %s6
  $region1: #{tpu_custom_call.1} parent=0
    #allocation2 [shape = 'u8[8192]{0}', space=vmem, size = 0x2000, scoped, tag = 'input window, operand 0']
    #allocation3 [shape = 's32[2]{0}', space=sflag, size = 0x8, scoped, tag = 'scoped memory for tpu_custom_call.1']
    #allocation4 [shape = 's32[2]{0}', space=sflag, size = 0x8, scoped, tag = 'scoped memory for tpu_custom_call.1']
    #allocation5 [shape = 'u8[8192]{0}', space=vmem, size = 0x2000, scoped, tag = 'output window, operand 0']
    %10 = vsyncpa [#allocation3], 0
    %s11 = scalar_lea.sflag [#allocation3], 1
    %12 = vsyncpa %s11, 0
    %13 = vsyncpa [#allocation4], 0
    %s14 = scalar_lea.sflag [#allocation4], 1
    %15 = vsyncpa %s14, 0
    loop: start=0, step=1, limit=4
    $region2: #{tpu_custom_call.1} parent=1 // loop_pre_header
      _
    $region3: #{tpu_custom_call.1} parent=1 // loop_header
      %s17 = sphi 0, %s21
      %p18 = scmp.ge.s32.totalorder %s17, 4
      %s24 = sphi 0, %s36
      %s25 = sphi 0, %s32
      %s26 = sphi 0, %s24
      %s27 = sphi 0, %s25
      %s28 = sphi 0, %s26
      %s29 = sphi 0, %s27
      %s41 = sphi 0, %s43
      %s44 = sphi 0, %s41
      %s45 = sphi 0, %s44
      %s61 = sphi 0, %s45
      %s65 = sphi 0, %s65
      %s67 = sphi 0, %s65
      %s68 = sphi 0, %s67
      %s82 = sphi 0, %s68
      %s86 = sphi 0, %s86
      %s88 = sphi 0, %s86
      %s89 = sphi 0, %s88
      %s103 = sphi 0, %s89
      %s107 = sphi 0, %s107
      %s109 = sphi 0, %s107
      %s110 = sphi 0, %s109
      %s124 = sphi 0, %s110
      %s128 = sphi 0, %s128
      %s130 = sphi 0, %s128
      %s131 = sphi 0, %s130
      %s145 = sphi 0, %s131
      %s153 = sphi 0, %s155
      %s156 = sphi 0, %s153
      %s157 = sphi 0, %s156
      %s173 = sphi 0, %s157
    $region4: #{tpu_custom_call.1} parent=1 // loop_header_branch
      %20 = sbr.rel (%p18) target = $region8
    $region5: #{tpu_custom_call.1} parent=1 // loop_body
      %s22 = ssub.s32 %s17, 1
      %s23 = ssub.s32 %s17, 2
      %s30 = sadd.s32 1, %s25
      %p31 = scmp.ge.s32.totalorder %s30, 1
      %s32 = scalar_select %p31, 0, %s30
      %s33 = sadd.s32 1, %s24
      %s34 = scalar_select %p31, %s33, %s24
      %p35 = scmp.ge.s32.totalorder %s34, 2
      %s36 = scalar_select %p35, 0, %s34
      %s37 = ssub.s32 %s24, %s36
      %s38 = ssub.s32 %s25, %s32
      %s39 = sor.u32 %s37, %s38
      %p40 = scmp.eq.s32.totalorder %s39, 0
      %s42 = sadd.s32 %s41, 1
      %s43 = scalar_select %p40, %s41, %s42
      %p46 = pneg %p40
      %p47 = scmp.eq.s32.totalorder %s17, 1
      %p48 = por %p46, %p47
      %p49 = scmp.ne.s32.totalorder %s41, %s44
      %p50 = scmp.eq.s32.totalorder %s17, 0
      %p51 = por %p49, %p50
      %p52 = scmp.ne.s32.totalorder %s41, %s44
      %p53 = scmp.eq.s32.totalorder %s22, 1
      %p54 = por %p52, %p53
      %p55 = scmp.ne.s32.totalorder %s44, %s45
      %p56 = scmp.eq.s32.totalorder %s22, 0
      %p57 = por %p55, %p56
      %p58 = scmp.ne.s32.totalorder %s44, %s45
      %p59 = scmp.eq.s32.totalorder %s23, 1
      %p60 = por %p58, %p59
      %p62 = scmp.ne.s32.totalorder %s45, %s61
      %p63 = scmp.eq.s32.totalorder %s23, 0
      %p64 = por %p62, %p63
      %s66 = sadd.s32 %s65, 1
      %p69 = scmp.eq.s32.totalorder %s17, 1
      %p70 = scmp.ne.s32.totalorder %s65, %s67
      %p71 = scmp.eq.s32.totalorder %s17, 0
      %p72 = por %p70, %p71
      %p73 = scmp.ne.s32.totalorder %s65, %s67
      %p74 = scmp.eq.s32.totalorder %s22, 1
      %p75 = por %p73, %p74
      %p76 = scmp.ne.s32.totalorder %s67, %s68
      %p77 = scmp.eq.s32.totalorder %s22, 0
      %p78 = por %p76, %p77
      %p79 = scmp.ne.s32.totalorder %s67, %s68
      %p80 = scmp.eq.s32.totalorder %s23, 1
      %p81 = por %p79, %p80
      %p83 = scmp.ne.s32.totalorder %s68, %s82
      %p84 = scmp.eq.s32.totalorder %s23, 0
      %p85 = por %p83, %p84
      %s87 = sadd.s32 %s86, 1
      %p90 = scmp.eq.s32.totalorder %s17, 1
      %p91 = scmp.ne.s32.totalorder %s86, %s88
      %p92 = scmp.eq.s32.totalorder %s17, 0
      %p93 = por %p91, %p92
      %p94 = scmp.ne.s32.totalorder %s86, %s88
      %p95 = scmp.eq.s32.totalorder %s22, 1
      %p96 = por %p94, %p95
      %p97 = scmp.ne.s32.totalorder %s88, %s89
      %p98 = scmp.eq.s32.totalorder %s22, 0
      %p99 = por %p97, %p98
      %p100 = scmp.ne.s32.totalorder %s88, %s89
      %p101 = scmp.eq.s32.totalorder %s23, 1
      %p102 = por %p100, %p101
      %p104 = scmp.ne.s32.totalorder %s89, %s103
      %p105 = scmp.eq.s32.totalorder %s23, 0
      %p106 = por %p104, %p105
      %s108 = sadd.s32 %s107, 1
      %p111 = scmp.eq.s32.totalorder %s17, 1
      %p112 = scmp.ne.s32.totalorder %s107, %s109
      %p113 = scmp.eq.s32.totalorder %s17, 0
      %p114 = por %p112, %p113
      %p115 = scmp.ne.s32.totalorder %s107, %s109
      %p116 = scmp.eq.s32.totalorder %s22, 1
      %p117 = por %p115, %p116
      %p118 = scmp.ne.s32.totalorder %s109, %s110
      %p119 = scmp.eq.s32.totalorder %s22, 0
      %p120 = por %p118, %p119
      %p121 = scmp.ne.s32.totalorder %s109, %s110
      %p122 = scmp.eq.s32.totalorder %s23, 1
      %p123 = por %p121, %p122
      %p125 = scmp.ne.s32.totalorder %s110, %s124
      %p126 = scmp.eq.s32.totalorder %s23, 0
      %p127 = por %p125, %p126
      %s129 = sadd.s32 %s128, 1
      %p132 = scmp.eq.s32.totalorder %s17, 1
      %p133 = scmp.ne.s32.totalorder %s128, %s130
      %p134 = scmp.eq.s32.totalorder %s17, 0
      %p135 = por %p133, %p134
      %p136 = scmp.ne.s32.totalorder %s128, %s130
      %p137 = scmp.eq.s32.totalorder %s22, 1
      %p138 = por %p136, %p137
      %p139 = scmp.ne.s32.totalorder %s130, %s131
      %p140 = scmp.eq.s32.totalorder %s22, 0
      %p141 = por %p139, %p140
      %p142 = scmp.ne.s32.totalorder %s130, %s131
      %p143 = scmp.eq.s32.totalorder %s23, 1
      %p144 = por %p142, %p143
      %p146 = scmp.ne.s32.totalorder %s131, %s145
      %p147 = scmp.eq.s32.totalorder %s23, 0
      %p148 = por %p146, %p147
      %s149 = ssub.s32 %s24, %s36
      %s150 = ssub.s32 %s25, %s32
      %s151 = sor.u32 %s149, %s150
      %p152 = scmp.eq.s32.totalorder %s151, 0
      %s154 = sadd.s32 %s153, 1
      %s155 = scalar_select %p152, %s153, %s154
      %p158 = pneg %p152
      %p159 = scmp.eq.s32.totalorder %s17, 1
      %p160 = por %p158, %p159
      %p161 = scmp.ne.s32.totalorder %s153, %s156
      %p162 = scmp.eq.s32.totalorder %s17, 0
      %p163 = por %p161, %p162
      %p164 = scmp.ne.s32.totalorder %s153, %s156
      %p165 = scmp.eq.s32.totalorder %s22, 1
      %p166 = por %p164, %p165
      %p167 = scmp.ne.s32.totalorder %s156, %s157
      %p168 = scmp.eq.s32.totalorder %s22, 0
      %p169 = por %p167, %p168
      %p170 = scmp.ne.s32.totalorder %s156, %s157
      %p171 = scmp.eq.s32.totalorder %s23, 1
      %p172 = por %p170, %p171
      %p174 = scmp.ne.s32.totalorder %s157, %s173
      %p175 = scmp.eq.s32.totalorder %s23, 0
      %p176 = por %p174, %p175
      %p177 = scmp.le.s32.totalorder 1, %s17
      %p178 = scmp.lt.s32.totalorder %s17, 3
      %p179 = pnand %p177, %p178
      %p180 = pneg %p179
      // Predicated region
      $region9: #{tpu_custom_call.1} parent=5 // pred_check
        _
      $region10: #{tpu_custom_call.1} parent=5 // pred_check_branch
        %182 = sbr.rel (%p179) target = $region12
      $region11: #{tpu_custom_call.1} parent=5 // pred_region
        %s183 = ssub.s32 %s17, 1
        // Predicated region
        $region13: #{tpu_custom_call.1} parent=11 // pred_check
          %p184 = pneg %p78
        $region14: #{tpu_custom_call.1} parent=11 // pred_check_branch
          %186 = sbr.rel (%p184) target = $region16
        $region15: #{tpu_custom_call.1} parent=11 // pred_region
          _
        $region16: #{tpu_custom_call.1} parent=11 // pred_fallthru
          _
        // Predicated region
        $region17: #{tpu_custom_call.1} parent=11 // pred_check
          %p187 = pneg %p99
        $region18: #{tpu_custom_call.1} parent=11 // pred_check_branch
          %189 = sbr.rel (%p187) target = $region20
        $region19: #{tpu_custom_call.1} parent=11 // pred_region
          _
        $region20: #{tpu_custom_call.1} parent=11 // pred_fallthru
          _
        // Predicated region
        $region21: #{tpu_custom_call.1} parent=11 // pred_check
          %p190 = pneg %p120
        $region22: #{tpu_custom_call.1} parent=11 // pred_check_branch
          %192 = sbr.rel (%p190) target = $region24
        $region23: #{tpu_custom_call.1} parent=11 // pred_region
          _
        $region24: #{tpu_custom_call.1} parent=11 // pred_fallthru
          _
        // Predicated region
        $region25: #{tpu_custom_call.1} parent=11 // pred_check
          %p193 = pneg %p141
        $region26: #{tpu_custom_call.1} parent=11 // pred_check_branch
          %195 = sbr.rel (%p193) target = $region28
        $region27: #{tpu_custom_call.1} parent=11 // pred_region
          _
        $region28: #{tpu_custom_call.1} parent=11 // pred_fallthru
          _
      $region12: #{tpu_custom_call.1} parent=5 // pred_fallthru
        _
      %p196 = scmp.lt.s32.totalorder %s17, 2
      // Predicated region
      $region29: #{tpu_custom_call.1} parent=5 // pred_check
        %p197 = pneg %p196
      $region30: #{tpu_custom_call.1} parent=5 // pred_check_branch
        %199 = sbr.rel (%p197) target = $region32
      $region31: #{tpu_custom_call.1} parent=5 // pred_region
        // Predicated region
        $region33: #{tpu_custom_call.1} parent=31 // pred_check
          %p200 = pneg %p51
        $region34: #{tpu_custom_call.1} parent=31 // pred_check_branch
          %202 = sbr.rel (%p200) target = $region36
        $region35: #{tpu_custom_call.1} parent=31 // pred_region
          %s203 = sand.u32 %s41, 1
          %s204 = scalar_lea.sflag [#allocation3], %s203
          %s205 = sand.u32 %s41, 1
          %s206 = smul.addr %s205, 8
          %s207 = scalar_lea.vmem [#allocation2], %s206
          %s208 = smul.u32 2, %s25
          %s210 = ssub.s32 128, 128
          %211 = vsyncadd %s204, %s210
          %s212 = smul.addr %s24, 2
          %s213 = sadd.s32 %s208, %s212
          %s214 = smul.addr %s213, 64
          %s215 = scalar_lea.hbm %s0, %s214
          %s217 = sshll.u32 %s207, 4
          %s218 = int_to_ptr.vmem [resolvable:$true] %s217
          %220 = dma.hbm_to_vmem [thread:$0]  %s215, 128, %s218, %s204
        $region36: #{tpu_custom_call.1} parent=31 // pred_fallthru
          _
      $region32: #{tpu_custom_call.1} parent=5 // pred_fallthru
        _
      %p221 = scmp.le.s32.totalorder 1, %s17
      %p222 = scmp.lt.s32.totalorder %s17, 3
      %p223 = pnand %p221, %p222
      %p224 = pneg %p223
      // Predicated region
      $region37: #{tpu_custom_call.1} parent=5 // pred_check
        _
      $region38: #{tpu_custom_call.1} parent=5 // pred_check_branch
        %226 = sbr.rel (%p223) target = $region40
      $region39: #{tpu_custom_call.1} parent=5 // pred_region
        %s227 = ssub.s32 %s17, 1
        %s228 = sand.u32 %s44, 1
        %s229 = scalar_lea.sflag [#allocation3], %s228
        %s230 = sand.u32 %s44, 1
        %s231 = smul.addr %s230, 8
        %s232 = scalar_lea.vmem [#allocation2], %s231
        // Predicated region
        $region41: #{tpu_custom_call.1} parent=39 // pred_check
          %p233 = pneg %p57
        $region42: #{tpu_custom_call.1} parent=39 // pred_check_branch
          %235 = sbr.rel (%p233) target = $region44
        $region43: #{tpu_custom_call.1} parent=39 // pred_region
          %236 = dma.done %s229, 128
        $region44: #{tpu_custom_call.1} parent=39 // pred_fallthru
          _
        %s237 = sand.u32 %s44, 1
        %s238 = scalar_lea.sflag [#allocation3], %s237
        %s239 = sand.u32 %s44, 1
        %s240 = smul.addr %s239, 8
        %s241 = scalar_lea.vmem [#allocation2], %s240
        %p242 = pneg %p57
        %p243 = pneg %p54
        %p244 = pneg %p78
        %p245 = pneg %p75
        %p246 = pneg %p99
        %p247 = pneg %p96
        %p248 = pneg %p120
        %p249 = pneg %p117
        %p250 = pneg %p141
        %p251 = pneg %p138
        %p252 = pneg %p169
        %p253 = pneg %p166
        %s254 = sand.u32 %s156, 1
        %s255 = scalar_lea.sflag [#allocation4], %s254
        %s256 = sand.u32 %s156, 1
        %s257 = smul.addr %s256, 8
        %s258 = scalar_lea.vmem [#allocation5], %s257
        %s259 = smul.u32 2, %s27
        %s260 = smul.u32 2, %s27
        %v261 = vld [vmem:[%s232] sm:$0xff]
        %v262 = vld [vmem:[%s1] sm:$0x3]
        %v264 = vcombine.high %v261, %v261
        %vm265 = vcmask 31744
        %v267 = vsel %vm265, %v262, 0
        %vm269 = vcmask 1043456
        %v270 = vsel %vm269, %v261, 0
        %v272 = vsel %vm269, %v264, 0
        %274 = vmatprep.subr.mxu0 %v272
        %275 = vmatpush1.msra.mxu0 %v270
        %276 = vmatprep.subr.mxu0 0.0
        %277 = vmatpush1.msra.mxu0 0.0
        %278 = vmatprep.subr.mxu0 0.0
        %279 = vmatpush1.msra.mxu0 0.0
        %280 = vmatprep.subr.mxu0 0.0
        %281 = vmatpush1.msra.mxu0 0.0
        %282 = vmatprep.subr.mxu0 0.0
        %283 = vmatpush1.msra.mxu0 0.0
        %284 = vmatprep.subr.mxu0 0.0
        %285 = vmatpush1.msra.mxu0 0.0
        %286 = vmatprep.subr.mxu0 0.0
        %287 = vmatpush1.msra.mxu0 0.0
        %288 = vmatprep.subr.mxu0 0.0
        %289 = vmatpush1.msra.mxu0 0.0
        %290 = vmatprep.subr.mxu0 0.0
        %291 = vmatpush1.msra.mxu0 0.0
        %292 = vmatprep.subr.mxu0 0.0
        %293 = vmatpush1.msra.mxu0 0.0
        %294 = vmatprep.subr.mxu0 0.0
        %295 = vmatpush1.msra.mxu0 0.0
        %296 = vmatprep.subr.mxu0 0.0
        %297 = vmatpush1.msra.mxu0 0.0
        %298 = vmatprep.subr.mxu0 0.0
        %299 = vmatpush1.msra.mxu0 0.0
        %300 = vmatprep.subr.mxu0 0.0
        %301 = vmatpush1.msra.mxu0 0.0
        %302 = vmatprep.subr.mxu0 0.0
        %303 = vmatpush1.msra.mxu0 0.0
        %304 = vmatprep.subr.mxu0 0.0
        %305 = vmatpush1.msra.mxu0 0.0
        %306 = vmatprep.subr.mxu0 0.0
        %307 = vmatpush1.msra.mxu0 0.0
        %308 = vmatprep.subr.mxu0 0.0
        %309 = vmatpush1.msra.mxu0 0.0
        %310 = vmatprep.subr.mxu0 0.0
        %311 = vmatpush1.msra.mxu0 0.0
        %312 = vmatprep.subr.mxu0 0.0
        %313 = vmatpush1.msra.mxu0 0.0
        %314 = vmatprep.subr.mxu0 0.0
        %315 = vmatpush1.msra.mxu0 0.0
        %316 = vmatprep.subr.mxu0 0.0
        %317 = vmatpush1.msra.mxu0 0.0
        %318 = vmatprep.subr.mxu0 0.0
        %319 = vmatpush1.msra.mxu0 0.0
        %320 = vmatprep.subr.mxu0 0.0
        %321 = vmatpush1.msra.mxu0 0.0
        %322 = vmatprep.subr.mxu0 0.0
        %323 = vmatpush1.msra.mxu0 0.0
        %324 = vmatprep.subr.mxu0 0.0
        %325 = vmatpush1.msra.mxu0 0.0
        %326 = vmatprep.subr.mxu0 0.0
        %327 = vmatpush1.msra.mxu0 0.0
        %328 = vmatprep.subr.mxu0 0.0
        %329 = vmatpush1.msra.mxu0 0.0
        %330 = vmatprep.subr.mxu0 0.0
        %331 = vmatpush1.msra.mxu0 0.0
        %332 = vmatprep.subr.mxu0 0.0
        %333 = vmatpush1.msra.mxu0 0.0
        %334 = vmatprep.subr.mxu0 0.0
        %335 = vmatpush1.msra.mxu0 0.0
        %336 = vmatprep.subr.mxu0 0.0
        %337 = vmatpush1.msra.mxu0 0.0
        %338 = vmatprep.mubr.f32.mxu0 0.0
        %339 = vmatmul.mubr.f32.gmra.mrb[0].mxu0 %v267
        %v340 = vpop.f32.mrb[0].mxu0
        %v341 = vadd.f32 0.0, %v340
        %v342 = vpop.f32.mrb[0].mxu0
        %v343 = vadd.f32 0.0, %v342
        %344 = vdwg.mxu0
        %v345 = vld [vmem:[%s2] sm:$0x3]
        %v347 = vsel %vm265, %v345, 0
        %349 = vmatprep.subr.mxu0 %v272
        %350 = vmatpush1.msra.mxu0 %v270
        %351 = vmatprep.subr.mxu0 0.0
        %352 = vmatpush1.msra.mxu0 0.0
        %353 = vmatprep.subr.mxu0 0.0
        %354 = vmatpush1.msra.mxu0 0.0
        %355 = vmatprep.subr.mxu0 0.0
        %356 = vmatpush1.msra.mxu0 0.0
        %357 = vmatprep.subr.mxu0 0.0
        %358 = vmatpush1.msra.mxu0 0.0
        %359 = vmatprep.subr.mxu0 0.0
        %360 = vmatpush1.msra.mxu0 0.0
        %361 = vmatprep.subr.mxu0 0.0
        %362 = vmatpush1.msra.mxu0 0.0
        %363 = vmatprep.subr.mxu0 0.0
        %364 = vmatpush1.msra.mxu0 0.0
        %365 = vmatprep.subr.mxu0 0.0
        %366 = vmatpush1.msra.mxu0 0.0
        %367 = vmatprep.subr.mxu0 0.0
        %368 = vmatpush1.msra.mxu0 0.0
        %369 = vmatprep.subr.mxu0 0.0
        %370 = vmatpush1.msra.mxu0 0.0
        %371 = vmatprep.subr.mxu0 0.0
        %372 = vmatpush1.msra.mxu0 0.0
        %373 = vmatprep.subr.mxu0 0.0
        %374 = vmatpush1.msra.mxu0 0.0
        %375 = vmatprep.subr.mxu0 0.0
        %376 = vmatpush1.msra.mxu0 0.0
        %377 = vmatprep.subr.mxu0 0.0
        %378 = vmatpush1.msra.mxu0 0.0
        %379 = vmatprep.subr.mxu0 0.0
        %380 = vmatpush1.msra.mxu0 0.0
        %381 = vmatprep.subr.mxu0 0.0
        %382 = vmatpush1.msra.mxu0 0.0
        %383 = vmatprep.subr.mxu0 0.0
        %384 = vmatpush1.msra.mxu0 0.0
        %385 = vmatprep.subr.mxu0 0.0
        %386 = vmatpush1.msra.mxu0 0.0
        %387 = vmatprep.subr.mxu0 0.0
        %388 = vmatpush1.msra.mxu0 0.0
        %389 = vmatprep.subr.mxu0 0.0
        %390 = vmatpush1.msra.mxu0 0.0
        %391 = vmatprep.subr.mxu0 0.0
        %392 = vmatpush1.msra.mxu0 0.0
        %393 = vmatprep.subr.mxu0 0.0
        %394 = vmatpush1.msra.mxu0 0.0
        %395 = vmatprep.subr.mxu0 0.0
        %396 = vmatpush1.msra.mxu0 0.0
        %397 = vmatprep.subr.mxu0 0.0
        %398 = vmatpush1.msra.mxu0 0.0
        %399 = vmatprep.subr.mxu0 0.0
        %400 = vmatpush1.msra.mxu0 0.0
        %401 = vmatprep.subr.mxu0 0.0
        %402 = vmatpush1.msra.mxu0 0.0
        %403 = vmatprep.subr.mxu0 0.0
        %404 = vmatpush1.msra.mxu0 0.0
        %405 = vmatprep.subr.mxu0 0.0
        %406 = vmatpush1.msra.mxu0 0.0
        %407 = vmatprep.subr.mxu0 0.0
        %408 = vmatpush1.msra.mxu0 0.0
        %409 = vmatprep.subr.mxu0 0.0
        %410 = vmatpush1.msra.mxu0 0.0
        %411 = vmatprep.subr.mxu0 0.0
        %412 = vmatpush1.msra.mxu0 0.0
        %413 = vmatprep.mubr.f32.mxu0 0.0
        %414 = vmatmul.mubr.f32.gmra.mrb[0].mxu0 %v347
        %v415 = vpop.f32.mrb[0].mxu0
        %v416 = vadd.f32 0.0, %v415
        %v417 = vpop.f32.mrb[0].mxu0
        %v418 = vadd.f32 0.0, %v417
        %419 = vdwg.mxu0
        %v420 = vld [vmem:[%s3] sm:$0x3]
        %v422 = vsel %vm265, %v420, 0
        %424 = vmatprep.subr.mxu0 %v272
        %425 = vmatpush1.msra.mxu0 %v270
        %426 = vmatprep.subr.mxu0 0.0
        %427 = vmatpush1.msra.mxu0 0.0
        %428 = vmatprep.subr.mxu0 0.0
        %429 = vmatpush1.msra.mxu0 0.0
        %430 = vmatprep.subr.mxu0 0.0
        %431 = vmatpush1.msra.mxu0 0.0
        %432 = vmatprep.subr.mxu0 0.0
        %433 = vmatpush1.msra.mxu0 0.0
        %434 = vmatprep.subr.mxu0 0.0
        %435 = vmatpush1.msra.mxu0 0.0
        %436 = vmatprep.subr.mxu0 0.0
        %437 = vmatpush1.msra.mxu0 0.0
        %438 = vmatprep.subr.mxu0 0.0
        %439 = vmatpush1.msra.mxu0 0.0
        %440 = vmatprep.subr.mxu0 0.0
        %441 = vmatpush1.msra.mxu0 0.0
        %442 = vmatprep.subr.mxu0 0.0
        %443 = vmatpush1.msra.mxu0 0.0
        %444 = vmatprep.subr.mxu0 0.0
        %445 = vmatpush1.msra.mxu0 0.0
        %446 = vmatprep.subr.mxu0 0.0
        %447 = vmatpush1.msra.mxu0 0.0
        %448 = vmatprep.subr.mxu0 0.0
        %449 = vmatpush1.msra.mxu0 0.0
        %450 = vmatprep.subr.mxu0 0.0
        %451 = vmatpush1.msra.mxu0 0.0
        %452 = vmatprep.subr.mxu0 0.0
        %453 = vmatpush1.msra.mxu0 0.0
        %454 = vmatprep.subr.mxu0 0.0
        %455 = vmatpush1.msra.mxu0 0.0
        %456 = vmatprep.subr.mxu0 0.0
        %457 = vmatpush1.msra.mxu0 0.0
        %458 = vmatprep.subr.mxu0 0.0
        %459 = vmatpush1.msra.mxu0 0.0
        %460 = vmatprep.subr.mxu0 0.0
        %461 = vmatpush1.msra.mxu0 0.0
        %462 = vmatprep.subr.mxu0 0.0
        %463 = vmatpush1.msra.mxu0 0.0
        %464 = vmatprep.subr.mxu0 0.0
        %465 = vmatpush1.msra.mxu0 0.0
        %466 = vmatprep.subr.mxu0 0.0
        %467 = vmatpush1.msra.mxu0 0.0
        %468 = vmatprep.subr.mxu0 0.0
        %469 = vmatpush1.msra.mxu0 0.0
        %470 = vmatprep.subr.mxu0 0.0
        %471 = vmatpush1.msra.mxu0 0.0
        %472 = vmatprep.subr.mxu0 0.0
        %473 = vmatpush1.msra.mxu0 0.0
        %474 = vmatprep.subr.mxu0 0.0
        %475 = vmatpush1.msra.mxu0 0.0
        %476 = vmatprep.subr.mxu0 0.0
        %477 = vmatpush1.msra.mxu0 0.0
        %478 = vmatprep.subr.mxu0 0.0
        %479 = vmatpush1.msra.mxu0 0.0
        %480 = vmatprep.subr.mxu0 0.0
        %481 = vmatpush1.msra.mxu0 0.0
        %482 = vmatprep.subr.mxu0 0.0
        %483 = vmatpush1.msra.mxu0 0.0
        %484 = vmatprep.subr.mxu0 0.0
        %485 = vmatpush1.msra.mxu0 0.0
        %486 = vmatprep.subr.mxu0 0.0
        %487 = vmatpush1.msra.mxu0 0.0
        %488 = vmatprep.mubr.f32.mxu0 0.0
        %489 = vmatmul.mubr.f32.gmra.mrb[0].mxu0 %v422
        %v490 = vpop.f32.mrb[0].mxu0
        %v491 = vadd.f32 0.0, %v490
        %v492 = vpop.f32.mrb[0].mxu0
        %v493 = vadd.f32 0.0, %v492
        %494 = vdwg.mxu0
        %v495 = vmul.f32 %v341, %v416
        %v496 = vmul.f32 %v343, %v418
        %vm497 = vcmask 1041408
        %v498 = vsel %vm497, %v495, -inf
        %v499 = vrot.slane %v498, 4
        %v500 = vmax.f32 %v498, %v499
        %v501 = vrot.slane %v500, 2
        %v502 = vmax.f32 %v500, %v501
        %v503 = vrot.slane %v502, 1
        %v504 = vmax.f32 %v502, %v503
        %v505 = vsel %vm497, %v496, -inf
        %v506 = vrot.slane %v505, 4
        %v507 = vmax.f32 %v505, %v506
        %v508 = vrot.slane %v507, 2
        %v509 = vmax.f32 %v507, %v508
        %v510 = vrot.slane %v509, 1
        %v511 = vmax.f32 %v509, %v510
        %v512 = vsub.f32 %v495, %v504
        %v513 = vsub.f32 %v496, %v511
        %v514 = vmul.f32 %v512, 1.442695
        %v515 = vpow.pop %v514
        %v516 = vmul.f32 %v513, 1.442695
        %v517 = vpow.pop %v516
        %v518 = vsel %vm497, %v515, 0.0
        %v519 = vrot.slane %v518, 4
        %v520 = vadd.f32 %v518, %v519
        %v521 = vrot.slane %v520, 2
        %v522 = vadd.f32 %v520, %v521
        %v523 = vrot.slane %v522, 1
        %v524 = vadd.f32 %v522, %v523
        %v525 = vsel %vm497, %v517, 0.0
        %v526 = vrot.slane %v525, 4
        %v527 = vadd.f32 %v525, %v526
        %v528 = vrot.slane %v527, 2
        %v529 = vadd.f32 %v527, %v528
        %v530 = vrot.slane %v529, 1
        %v531 = vadd.f32 %v529, %v530
        %v532 = vrcp.pop %v524
        %v533 = vrcp.pop %v531
        %v534 = vmul.f32 %v515, %v532
        %v535 = vmul.f32 %v517, %v533
        %v536 = vmul.f32 %v534, %v491
        %v537 = vmul.f32 %v535, %v493
        %v538 = vld [vmem:[%s4] sm:$0xf]
        %vm540 = vcmask 15360
        %v542 = vsel %vm540, %v538, 0
        %v545 = vsel %vm497, %v536, 0
        %v548 = vsel %vm497, %v537, 0
        %550 = vmatprep.subr.mxu0 %v548
        %551 = vmatpush1.msra.mxu0 %v545
        %552 = vmatprep.subr.mxu0 0.0
        %553 = vmatpush1.msra.mxu0 0.0
        %554 = vmatprep.subr.mxu0 0.0
        %555 = vmatpush1.msra.mxu0 0.0
        %556 = vmatprep.subr.mxu0 0.0
        %557 = vmatpush1.msra.mxu0 0.0
        %558 = vmatprep.subr.mxu0 0.0
        %559 = vmatpush1.msra.mxu0 0.0
        %560 = vmatprep.subr.mxu0 0.0
        %561 = vmatpush1.msra.mxu0 0.0
        %562 = vmatprep.subr.mxu0 0.0
        %563 = vmatpush1.msra.mxu0 0.0
        %564 = vmatprep.subr.mxu0 0.0
        %565 = vmatpush1.msra.mxu0 0.0
        %566 = vmatprep.subr.mxu0 0.0
        %567 = vmatpush1.msra.mxu0 0.0
        %568 = vmatprep.subr.mxu0 0.0
        %569 = vmatpush1.msra.mxu0 0.0
        %570 = vmatprep.subr.mxu0 0.0
        %571 = vmatpush1.msra.mxu0 0.0
        %572 = vmatprep.subr.mxu0 0.0
        %573 = vmatpush1.msra.mxu0 0.0
        %574 = vmatprep.subr.mxu0 0.0
        %575 = vmatpush1.msra.mxu0 0.0
        %576 = vmatprep.subr.mxu0 0.0
        %577 = vmatpush1.msra.mxu0 0.0
        %578 = vmatprep.subr.mxu0 0.0
        %579 = vmatpush1.msra.mxu0 0.0
        %580 = vmatprep.subr.mxu0 0.0
        %581 = vmatpush1.msra.mxu0 0.0
        %582 = vmatprep.subr.mxu0 0.0
        %583 = vmatpush1.msra.mxu0 0.0
        %584 = vmatprep.subr.mxu0 0.0
        %585 = vmatpush1.msra.mxu0 0.0
        %586 = vmatprep.subr.mxu0 0.0
        %587 = vmatpush1.msra.mxu0 0.0
        %588 = vmatprep.subr.mxu0 0.0
        %589 = vmatpush1.msra.mxu0 0.0
        %590 = vmatprep.subr.mxu0 0.0
        %591 = vmatpush1.msra.mxu0 0.0
        %592 = vmatprep.subr.mxu0 0.0
        %593 = vmatpush1.msra.mxu0 0.0
        %594 = vmatprep.subr.mxu0 0.0
        %595 = vmatpush1.msra.mxu0 0.0
        %596 = vmatprep.subr.mxu0 0.0
        %597 = vmatpush1.msra.mxu0 0.0
        %598 = vmatprep.subr.mxu0 0.0
        %599 = vmatpush1.msra.mxu0 0.0
        %600 = vmatprep.subr.mxu0 0.0
        %601 = vmatpush1.msra.mxu0 0.0
        %602 = vmatprep.subr.mxu0 0.0
        %603 = vmatpush1.msra.mxu0 0.0
        %604 = vmatprep.subr.mxu0 0.0
        %605 = vmatpush1.msra.mxu0 0.0
        %606 = vmatprep.subr.mxu0 0.0
        %607 = vmatpush1.msra.mxu0 0.0
        %608 = vmatprep.subr.mxu0 0.0
        %609 = vmatpush1.msra.mxu0 0.0
        %610 = vmatprep.subr.mxu0 0.0
        %611 = vmatpush1.msra.mxu0 0.0
        %612 = vmatprep.subr.mxu0 0.0
        %613 = vmatpush1.msra.mxu0 0.0
        %614 = vmatprep.mubr.f32.mxu0 0.0
        %615 = vmatmul.mubr.f32.gmra.mrb[0].mxu0 %v542
        %v616 = vpop.f32.mrb[0].mxu0
        %v617 = vadd.f32 %v261, %v616
        %v618 = vpop.f32.mrb[0].mxu0
        %v619 = vadd.f32 %v264, %v618
        %620 = vdwg.mxu0
        %v623 = vcombine.low %v617, %v619
        %625 = vst [vmem:[%s258] sm:$0xff] %v623
        %s626 = sand.u32 %s156, 1
        %s627 = scalar_lea.sflag [#allocation4], %s626
        %s628 = sand.u32 %s156, 1
        %s629 = smul.addr %s628, 8
        %s630 = scalar_lea.vmem [#allocation5], %s629
        // Predicated region
        $region45: #{tpu_custom_call.1} parent=39 // pred_check
          %p631 = pneg %p166
        $region46: #{tpu_custom_call.1} parent=39 // pred_check_branch
          %633 = sbr.rel (%p631) target = $region48
        $region47: #{tpu_custom_call.1} parent=39 // pred_region
          %s634 = smul.u32 2, %s27
          %s636 = ssub.s32 128, 128
          %637 = vsyncadd %s627, %s636
          %s638 = smul.addr %s26, 2
          %s639 = sadd.s32 %s634, %s638
          %s640 = smul.addr %s639, 64
          %s641 = scalar_lea.hbm %s5, %s640
          %s643 = sshll.u32 %s630, 4
          %s644 = int_to_ptr.vmem [resolvable:$true] %s643
          %646 = dma.vmem_to_hbm [thread:$0]  %s644, 128, %s641, %s627
        $region48: #{tpu_custom_call.1} parent=39 // pred_fallthru
          _
      $region40: #{tpu_custom_call.1} parent=5 // pred_fallthru
        _
      %p647 = scmp.le.s32.totalorder 2, %s17
      // Predicated region
      $region49: #{tpu_custom_call.1} parent=5 // pred_check
        %p648 = pneg %p647
      $region50: #{tpu_custom_call.1} parent=5 // pred_check_branch
        %650 = sbr.rel (%p648) target = $region52
      $region51: #{tpu_custom_call.1} parent=5 // pred_region
        %s651 = ssub.s32 %s17, 2
        // Predicated region
        $region53: #{tpu_custom_call.1} parent=51 // pred_check
          %p652 = pneg %p172
        $region54: #{tpu_custom_call.1} parent=51 // pred_check_branch
          %654 = sbr.rel (%p652) target = $region56
        $region55: #{tpu_custom_call.1} parent=51 // pred_region
          %s655 = sand.u32 %s157, 1
          %s656 = scalar_lea.sflag [#allocation4], %s655
          %s657 = sand.u32 %s157, 1
          %s658 = smul.addr %s657, 8
          %s659 = scalar_lea.vmem [#allocation5], %s658
          %660 = dma.done %s656, 128
        $region56: #{tpu_custom_call.1} parent=51 // pred_fallthru
          _
      $region52: #{tpu_custom_call.1} parent=5 // pred_fallthru
        _
    $region6: #{tpu_custom_call.1} parent=1 // loop_footer
      %s21 = sadd.s32 1, %s17
    $region7: #{tpu_custom_call.1} parent=1 // loop_footer_branch
      %16 = sbr.rel target = $region3
    $region8: #{tpu_custom_call.1} parent=1 // loop_exit
      _
    %661 = vsyncpa [#allocation3], 1
    %s662 = scalar_lea.sflag [#allocation3], 1
    %663 = vsyncpa %s662, 1
    %664 = vsyncpa [#allocation4], 1
    %s665 = scalar_lea.sflag [#allocation4], 1
    %666 = vsyncpa %s665, 1

</llo_original>
